<compile_context>
chip_gen: v7x
topology: tpu7x:2x2x1
jax: 0.10.0
libtpu: 0.0.40
codegen_flags: <defaults>
</compile_context>

<pallas_src>
import math

import jax
import jax.numpy as jnp
from jax.experimental import pallas as pl
from jax.experimental.pallas import tpu as pltpu

_EPS = 1e-5
_INV_SQRT2 = 1.0 / math.sqrt(2.0)


def _round_up(x, m):
    return ((x + m - 1) // m) * m


def _erf(z):
    # Abramowitz & Stegun 7.1.26 rational approximation, |err| <= 1.5e-7.
    a1, a2, a3, a4, a5 = (0.254829592, -0.284496736, 1.421413741,
                          -1.453152027, 1.061405429)
    p = 0.3275911
    az = jnp.abs(z)
    t = 1.0 / (1.0 + p * az)
    poly = ((((a5 * t + a4) * t + a3) * t + a2) * t + a1) * t
    y = 1.0 - poly * jnp.exp(-az * az)
    return jnp.where(z < 0, -y, y)


def _gelu_erf(x):
    # Exact-erf GELU (PyTorch nn.GELU / F.gelu default semantics).
    return 0.5 * x * (1.0 + _erf(x * _INV_SQRT2))


def _layernorm_feat(h, gamma, beta):
    # LayerNorm over the feature axis (axis 0, feature-major layout); biased
    # variance + eps inside rsqrt, matching PyTorch nn.LayerNorm.  Single-pass
    # statistics: var = E[h^2] - mu^2 (one traversal for both moments).
    mu = jnp.mean(h, axis=0, keepdims=True)               # (1, TB)
    ex2 = jnp.mean(h * h, axis=0, keepdims=True)          # (1, TB)
    var = ex2 - mu * mu
    return (h - mu) * jax.lax.rsqrt(var + _EPS) * gamma + beta


def mlp_kernel(x_ref, w1_ref, w2_ref, vec_ref, o_ref):
    # x_ref: (TB, 25) batch-major (f32 or bf16)
    # w1_ref: (64, 25)  w2_ref: (16, 64)  vec_ref: (64, 8)  o_ref: (1, TB)
    x = x_ref[...].astype(jnp.float32)   # bf16 inputs upcast in VMEM (HBM already saved)
    vec = vec_ref[...]

    b1, g1, be1 = vec[:, 0:1], vec[:, 1:2], vec[:, 2:3]           # (64, 1)
    b2, g2, be2 = vec[0:16, 3:4], vec[0:16, 4:5], vec[0:16, 5:6]  # (16, 1)
    w3c = vec[0:16, 6:7]                                          # (16, 1)
    b3 = vec[0:1, 7:8]                                            # (1, 1)

    # fc1: contract the 25-wide feature axis of both operands -> feature-major
    # (64, TB); the MXU does the batch-major -> feature-major flip.
    h1 = jax.lax.dot_general(w1_ref[...], x, (((1,), (1,)), ((), ())),
                             preferred_element_type=jnp.float32) + b1   # (64, TB)
    a1 = _gelu_erf(_layernorm_feat(h1, g1, be1))     # dropout1: identity (eval)

    # fc2 -> ln2 -> gelu   (dropout2: identity in eval mode)
    h2 = jnp.dot(w2_ref[...], a1, preferred_element_type=jnp.float32) + b2  # (16, TB)
    a2 = _gelu_erf(_layernorm_feat(h2, g2, be2))

    # fc3 as VPU multiply + sublane reduce; lane-dense (1, TB) output.
    out = jnp.sum(a2 * w3c, axis=0, keepdims=True) + b3
    o_ref[...] = out.astype(o_ref.dtype)


def age_prediction_forward(x, params, *, tile_b=4096):
    """x: (B, 25) f32 or bf16, batch-major; params = (w1 (64,25), w2 (16,64), vecs (64,8))."""
    w1, w2, vecs = params
    B = x.shape[0]

    tile_b = max(128, _round_up(tile_b, 128))            # lane-axis tile, mult. of 128
    # Cap near round_up(B,128) for small B; guarantee >=2 grid steps for large B
    # so the "parallel" axis shards across both v7x TensorCores.
    TB = min(tile_b, max(128, _round_up((B + 1) // 2, 128)))
    B_pad = _round_up(B, TB)

    if B_pad != B:
        # Batch-axis-only pad (no transpose). Copy-free when B is tile-aligned.
        x = jnp.pad(x, ((0, B_pad - B), (0, 0)))

    out = pl.pallas_call(
        mlp_kernel,
        out_shape=jax.ShapeDtypeStruct((1, B_pad), jnp.float32),
        grid=(B_pad // TB,),
        in_specs=[
            pl.BlockSpec((TB, 25), lambda i: (i, 0)),     # x tile (pipelined)
            pl.BlockSpec((64, 25), lambda i: (0, 0)),     # fc1 weight (VMEM-resident)
            pl.BlockSpec((16, 64), lambda i: (0, 0)),     # fc2 weight (VMEM-resident)
            pl.BlockSpec((64, 8), lambda i: (0, 0)),      # packed vectors (resident)
        ],
        out_specs=pl.BlockSpec((1, TB), lambda i: (0, i)),
        compiler_params=pltpu.CompilerParams(
            dimension_semantics=("parallel",),
            vmem_limit_bytes=32 * 1024 * 1024),
    )(x, w1, w2, vecs)

    return out[0, :B].reshape(B, 1)


def pack_params(w1, b1, g1, be1, w2, b2, g2, be2, w3, b3):
    """Pack the PyTorch-layout tensors into the kernel's 3 operands."""
    vecs = jnp.zeros((64, 8), jnp.float32)
    vecs = vecs.at[:, 0].set(b1.reshape(64))
    vecs = vecs.at[:, 1].set(g1.reshape(64))
    vecs = vecs.at[:, 2].set(be1.reshape(64))
    vecs = vecs.at[:16, 3].set(b2.reshape(16))
    vecs = vecs.at[:16, 4].set(g2.reshape(16))
    vecs = vecs.at[:16, 5].set(be2.reshape(16))
    vecs = vecs.at[:16, 6].set(w3.reshape(16))
    vecs = vecs.at[0, 7].set(b3.reshape(()))
    return (w1.astype(jnp.float32),      # (64, 25), PyTorch [out, in] layout
            w2.astype(jnp.float32),      # (16, 64)
            vecs)


def init_params(key):
    """Deterministic init matching the PyTorch _init_weights semantics."""
    k1, k2, k3 = jax.random.split(key, 3)

    # fc1 / fc2: kaiming_normal_(nonlinearity='leaky_relu'), fan_in mode.
    gain = math.sqrt(2.0)
    w1 = jax.random.normal(k1, (64, 25), jnp.float32) * (gain / math.sqrt(25.0))
    w2 = jax.random.normal(k2, (16, 64), jnp.float32) * (gain / math.sqrt(64.0))
    # fc3: xavier_normal_
    w3 = jax.random.normal(k3, (1, 16), jnp.float32) * math.sqrt(2.0 / (16.0 + 1.0))

    zeros64, ones64 = jnp.zeros((64,), jnp.float32), jnp.ones((64,), jnp.float32)
    zeros16, ones16 = jnp.zeros((16,), jnp.float32), jnp.ones((16,), jnp.float32)
    return pack_params(w1, zeros64, ones64, zeros64,
                       w2, zeros16, ones16, zeros16,
                       w3, jnp.zeros((1,), jnp.float32))


def reference_forward(x, params):
    """Pure-JAX batch-major reference (exact-erf GELU, eval-mode dropout)."""
    w1, w2, vecs = params
    x = x.astype(jnp.float32)
    b1, g1, be1 = vecs[:, 0], vecs[:, 1], vecs[:, 2]
    b2, g2, be2 = vecs[:16, 3], vecs[:16, 4], vecs[:16, 5]
    w3, b3 = vecs[:16, 6], vecs[0, 7]

    def ln(h, g, b):
        mu = jnp.mean(h, axis=-1, keepdims=True)
        var = jnp.mean((h - mu) ** 2, axis=-1, keepdims=True)
        return (h - mu) * jax.lax.rsqrt(var + _EPS) * g + b

    a1 = jax.nn.gelu(ln(x @ w1.T + b1, g1, be1), approximate=False)
    a2 = jax.nn.gelu(ln(a1 @ w2.T + b2, g2, be2), approximate=False)
    return a2 @ w3[:, None] + b3


if __name__ == "__main__":
    key = jax.random.PRNGKey(0)
    kx, kp = jax.random.split(key)
    params = init_params(kp)

    # Small primary check (f32).
    B = 8
    x = jax.random.normal(kx, (B, 25), jnp.float32)
    out = jax.block_until_ready(age_prediction_forward(x, params))
    ref = reference_forward(x, params)
    assert out.shape == (B, 1), out.shape
    assert jnp.allclose(out, ref, atol=1e-4, rtol=1e-4), (
        f"max err {float(jnp.max(jnp.abs(out - ref)))}")

    # Ragged-batch check exercising the multi-step grid + batch-pad path.
    B2 = 300
    x2 = jax.random.normal(kx, (B2, 25), jnp.float32)
    out2 = jax.block_until_ready(age_prediction_forward(x2, params, tile_b=128))
    ref2 = reference_forward(x2, params)
    assert out2.shape == (B2, 1), out2.shape
    assert jnp.allclose(out2, ref2, atol=1e-4, rtol=1e-4), (
        f"max err {float(jnp.max(jnp.abs(out2 - ref2)))}")

    # bf16-input check (halves x HBM traffic); reference uses the same rounded x.
    B3 = 256
    x3 = jax.random.normal(kx, (B3, 25), jnp.float32).astype(jnp.bfloat16)
    out3 = jax.block_until_ready(age_prediction_forward(x3, params))
    ref3 = reference_forward(x3.astype(jnp.float32), params)
    assert out3.shape == (B3, 1), out3.shape
    assert jnp.allclose(out3, ref3, atol=1e-3, rtol=1e-3), (
        f"max err {float(jnp.max(jnp.abs(out3 - ref3)))}")

    print("KERNEL_OK")
</pallas_src>

<mosaic_0001>
module attributes {stable_mosaic.version = 11 : i64} {
  func.func @mlp_kernel(%arg0: i32, %arg1: memref<128x25xf32, #tpu.memory_space<vmem>>, %arg2: memref<64x25xf32, #tpu.memory_space<vmem>>, %arg3: memref<16x64xf32, #tpu.memory_space<vmem>>, %arg4: memref<64x8xf32, #tpu.memory_space<vmem>>, %arg5: memref<1x128xf32, #tpu.memory_space<vmem>>) attributes {dimension_semantics = [#tpu.dimension_semantics<parallel>], iteration_bounds = array<i64: 1>, scalar_prefetch = 0 : i64, scratch_operands = 0 : i64, tpu.core_type = #tpu.core_type<tc>, window_params = [{transform_indices = @transform_0, window_bounds = array<i64: 128, 25>}, {pipeline_mode = #tpu.pipeline_mode<synchronous>, transform_indices = @transform_1, window_bounds = array<i64: 64, 25>}, {pipeline_mode = #tpu.pipeline_mode<synchronous>, transform_indices = @transform_2, window_bounds = array<i64: 16, 64>}, {pipeline_mode = #tpu.pipeline_mode<synchronous>, transform_indices = @transform_3, window_bounds = array<i64: 64, 8>}, {transform_indices = @transform_4, window_bounds = array<i64: 1, 128>}]} {
    %c0 = arith.constant 0 : index
    %c0_0 = arith.constant 0 : index
    %0 = vector.load %arg1[%c0, %c0_0] : memref<128x25xf32, #tpu.memory_space<vmem>>, vector<128x25xf32>
    %c0_1 = arith.constant 0 : index
    %c0_2 = arith.constant 0 : index
    %1 = vector.load %arg4[%c0_1, %c0_2] : memref<64x8xf32, #tpu.memory_space<vmem>>, vector<64x8xf32>
    %2 = vector.extract_strided_slice %1 {offsets = [0, 0], sizes = [64, 1], strides = [1, 1]} : vector<64x8xf32> to vector<64x1xf32>
    %3 = vector.extract_strided_slice %1 {offsets = [0, 1], sizes = [64, 1], strides = [1, 1]} : vector<64x8xf32> to vector<64x1xf32>
    %4 = vector.extract_strided_slice %1 {offsets = [0, 2], sizes = [64, 1], strides = [1, 1]} : vector<64x8xf32> to vector<64x1xf32>
    %5 = vector.extract_strided_slice %1 {offsets = [0, 3], sizes = [16, 1], strides = [1, 1]} : vector<64x8xf32> to vector<16x1xf32>
    %6 = vector.extract_strided_slice %1 {offsets = [0, 4], sizes = [16, 1], strides = [1, 1]} : vector<64x8xf32> to vector<16x1xf32>
    %7 = vector.extract_strided_slice %1 {offsets = [0, 5], sizes = [16, 1], strides = [1, 1]} : vector<64x8xf32> to vector<16x1xf32>
    %8 = vector.extract_strided_slice %1 {offsets = [0, 6], sizes = [16, 1], strides = [1, 1]} : vector<64x8xf32> to vector<16x1xf32>
    %9 = vector.extract_strided_slice %1 {offsets = [0, 7], sizes = [1, 1], strides = [1, 1]} : vector<64x8xf32> to vector<1x1xf32>
    %c0_3 = arith.constant 0 : index
    %c0_4 = arith.constant 0 : index
    %10 = vector.load %arg2[%c0_3, %c0_4] : memref<64x25xf32, #tpu.memory_space<vmem>>, vector<64x25xf32>
    %cst = arith.constant dense<0.000000e+00> : vector<64x128xf32>
    %11 = tpu.matmul %10, %0, %cst {dimension_numbers = #tpu.dot_dimension_numbers<[1], [1], [0], [0], [0, 0, 1, 0], [], []>} : vector<64x25xf32>, vector<128x25xf32>, vector<64x128xf32> -> vector<64x128xf32>
    %12 = vector.broadcast %2 : vector<64x1xf32> to vector<64x128xf32>
    %13 = arith.addf %11, %12 : vector<64x128xf32>
    %cst_5 = arith.constant dense<0.000000e+00> : vector<128xf32>
    %14 = vector.multi_reduction <add>, %13, %cst_5 [0] : vector<64x128xf32> to vector<128xf32>
    %15 = vector.shape_cast %14 : vector<128xf32> to vector<1x128xf32>
    %cst_6 = arith.constant 6.400000e+01 : f32
    %16 = vector.broadcast %cst_6 : f32 to vector<1x128xf32>
    %17 = arith.divf %15, %16 : vector<1x128xf32>
    %18 = arith.mulf %13, %13 : vector<64x128xf32>
    %cst_7 = arith.constant dense<0.000000e+00> : vector<128xf32>
    %19 = vector.multi_reduction <add>, %18, %cst_7 [0] : vector<64x128xf32> to vector<128xf32>
    %20 = vector.shape_cast %19 : vector<128xf32> to vector<1x128xf32>
    %cst_8 = arith.constant 6.400000e+01 : f32
    %21 = vector.broadcast %cst_8 : f32 to vector<1x128xf32>
    %22 = arith.divf %20, %21 : vector<1x128xf32>
    %23 = arith.mulf %17, %17 : vector<1x128xf32>
    %24 = arith.subf %22, %23 : vector<1x128xf32>
    %25 = vector.broadcast %17 : vector<1x128xf32> to vector<64x128xf32>
    %26 = arith.subf %13, %25 : vector<64x128xf32>
    %cst_9 = arith.constant 9.99999974E-6 : f32
    %27 = vector.broadcast %cst_9 : f32 to vector<1x128xf32>
    %28 = arith.addf %24, %27 : vector<1x128xf32>
    %29 = math.rsqrt %28 : vector<1x128xf32>
    %30 = vector.broadcast %29 : vector<1x128xf32> to vector<64x128xf32>
    %31 = arith.mulf %26, %30 : vector<64x128xf32>
    %32 = vector.broadcast %3 : vector<64x1xf32> to vector<64x128xf32>
    %33 = arith.mulf %31, %32 : vector<64x128xf32>
    %34 = vector.broadcast %4 : vector<64x1xf32> to vector<64x128xf32>
    %35 = arith.addf %33, %34 : vector<64x128xf32>
    %cst_10 = arith.constant 5.000000e-01 : f32
    %36 = vector.broadcast %cst_10 : f32 to vector<64x128xf32>
    %37 = arith.mulf %36, %35 : vector<64x128xf32>
    %cst_11 = arith.constant 0.707106769 : f32
    %38 = vector.broadcast %cst_11 : f32 to vector<64x128xf32>
    %39 = arith.mulf %35, %38 : vector<64x128xf32>
    %40 = math.absf %39 : vector<64x128xf32>
    %cst_12 = arith.constant 0.327591091 : f32
    %41 = vector.broadcast %cst_12 : f32 to vector<64x128xf32>
    %42 = arith.mulf %41, %40 : vector<64x128xf32>
    %cst_13 = arith.constant 1.000000e+00 : f32
    %43 = vector.broadcast %cst_13 : f32 to vector<64x128xf32>
    %44 = arith.addf %43, %42 : vector<64x128xf32>
    %cst_14 = arith.constant 1.000000e+00 : f32
    %45 = vector.broadcast %cst_14 : f32 to vector<64x128xf32>
    %46 = arith.divf %45, %44 : vector<64x128xf32>
    %cst_15 = arith.constant 1.06140542 : f32
    %47 = vector.broadcast %cst_15 : f32 to vector<64x128xf32>
    %48 = arith.mulf %47, %46 : vector<64x128xf32>
    %cst_16 = arith.constant -1.45315206 : f32
    %49 = vector.broadcast %cst_16 : f32 to vector<64x128xf32>
    %50 = arith.addf %48, %49 : vector<64x128xf32>
    %51 = arith.mulf %50, %46 : vector<64x128xf32>
    %cst_17 = arith.constant 1.42141378 : f32
    %52 = vector.broadcast %cst_17 : f32 to vector<64x128xf32>
    %53 = arith.addf %51, %52 : vector<64x128xf32>
    %54 = arith.mulf %53, %46 : vector<64x128xf32>
    %cst_18 = arith.constant -0.284496725 : f32
    %55 = vector.broadcast %cst_18 : f32 to vector<64x128xf32>
    %56 = arith.addf %54, %55 : vector<64x128xf32>
    %57 = arith.mulf %56, %46 : vector<64x128xf32>
    %cst_19 = arith.constant 0.254829586 : f32
    %58 = vector.broadcast %cst_19 : f32 to vector<64x128xf32>
    %59 = arith.addf %57, %58 : vector<64x128xf32>
    %60 = arith.mulf %59, %46 : vector<64x128xf32>
    %cst_20 = arith.constant 0.000000e+00 : f32
    %61 = vector.broadcast %cst_20 : f32 to vector<64x128xf32>
    %62 = arith.subf %61, %40 : vector<64x128xf32>
    %63 = arith.mulf %62, %40 : vector<64x128xf32>
    %64 = math.exp %63 : vector<64x128xf32>
    %65 = arith.mulf %60, %64 : vector<64x128xf32>
    %cst_21 = arith.constant 1.000000e+00 : f32
    %66 = vector.broadcast %cst_21 : f32 to vector<64x128xf32>
    %67 = arith.subf %66, %65 : vector<64x128xf32>
    %cst_22 = arith.constant 0.000000e+00 : f32
    %68 = vector.broadcast %cst_22 : f32 to vector<64x128xf32>
    %69 = arith.cmpf olt, %39, %68 : vector<64x128xf32>
    %cst_23 = arith.constant 0.000000e+00 : f32
    %70 = vector.broadcast %cst_23 : f32 to vector<64x128xf32>
    %71 = arith.subf %70, %67 : vector<64x128xf32>
    %72 = arith.select %69, %71, %67 : vector<64x128xi1>, vector<64x128xf32>
    %cst_24 = arith.constant 1.000000e+00 : f32
    %73 = vector.broadcast %cst_24 : f32 to vector<64x128xf32>
    %74 = arith.addf %73, %72 : vector<64x128xf32>
    %75 = arith.mulf %37, %74 : vector<64x128xf32>
    %c0_25 = arith.constant 0 : index
    %c0_26 = arith.constant 0 : index
    %76 = vector.load %arg3[%c0_25, %c0_26] : memref<16x64xf32, #tpu.memory_space<vmem>>, vector<16x64xf32>
    %cst_27 = arith.constant dense<0.000000e+00> : vector<16x128xf32>
    %77 = tpu.matmul %76, %75, %cst_27 {dimension_numbers = #tpu.dot_dimension_numbers<[1], [0], [0], [1], [0, 0, 1, 1], [], []>} : vector<16x64xf32>, vector<64x128xf32>, vector<16x128xf32> -> vector<16x128xf32>
    %78 = vector.broadcast %5 : vector<16x1xf32> to vector<16x128xf32>
    %79 = arith.addf %77, %78 : vector<16x128xf32>
    %cst_28 = arith.constant dense<0.000000e+00> : vector<128xf32>
    %80 = vector.multi_reduction <add>, %79, %cst_28 [0] : vector<16x128xf32> to vector<128xf32>
    %81 = vector.shape_cast %80 : vector<128xf32> to vector<1x128xf32>
    %cst_29 = arith.constant 1.600000e+01 : f32
    %82 = vector.broadcast %cst_29 : f32 to vector<1x128xf32>
    %83 = arith.divf %81, %82 : vector<1x128xf32>
    %84 = arith.mulf %79, %79 : vector<16x128xf32>
    %cst_30 = arith.constant dense<0.000000e+00> : vector<128xf32>
    %85 = vector.multi_reduction <add>, %84, %cst_30 [0] : vector<16x128xf32> to vector<128xf32>
    %86 = vector.shape_cast %85 : vector<128xf32> to vector<1x128xf32>
    %cst_31 = arith.constant 1.600000e+01 : f32
    %87 = vector.broadcast %cst_31 : f32 to vector<1x128xf32>
    %88 = arith.divf %86, %87 : vector<1x128xf32>
    %89 = arith.mulf %83, %83 : vector<1x128xf32>
    %90 = arith.subf %88, %89 : vector<1x128xf32>
    %91 = vector.broadcast %83 : vector<1x128xf32> to vector<16x128xf32>
    %92 = arith.subf %79, %91 : vector<16x128xf32>
    %cst_32 = arith.constant 9.99999974E-6 : f32
    %93 = vector.broadcast %cst_32 : f32 to vector<1x128xf32>
    %94 = arith.addf %90, %93 : vector<1x128xf32>
    %95 = math.rsqrt %94 : vector<1x128xf32>
    %96 = vector.broadcast %95 : vector<1x128xf32> to vector<16x128xf32>
    %97 = arith.mulf %92, %96 : vector<16x128xf32>
    %98 = vector.broadcast %6 : vector<16x1xf32> to vector<16x128xf32>
    %99 = arith.mulf %97, %98 : vector<16x128xf32>
    %100 = vector.broadcast %7 : vector<16x1xf32> to vector<16x128xf32>
    %101 = arith.addf %99, %100 : vector<16x128xf32>
    %cst_33 = arith.constant 5.000000e-01 : f32
    %102 = vector.broadcast %cst_33 : f32 to vector<16x128xf32>
    %103 = arith.mulf %102, %101 : vector<16x128xf32>
    %cst_34 = arith.constant 0.707106769 : f32
    %104 = vector.broadcast %cst_34 : f32 to vector<16x128xf32>
    %105 = arith.mulf %101, %104 : vector<16x128xf32>
    %106 = math.absf %105 : vector<16x128xf32>
    %cst_35 = arith.constant 0.327591091 : f32
    %107 = vector.broadcast %cst_35 : f32 to vector<16x128xf32>
    %108 = arith.mulf %107, %106 : vector<16x128xf32>
    %cst_36 = arith.constant 1.000000e+00 : f32
    %109 = vector.broadcast %cst_36 : f32 to vector<16x128xf32>
    %110 = arith.addf %109, %108 : vector<16x128xf32>
    %cst_37 = arith.constant 1.000000e+00 : f32
    %111 = vector.broadcast %cst_37 : f32 to vector<16x128xf32>
    %112 = arith.divf %111, %110 : vector<16x128xf32>
    %cst_38 = arith.constant 1.06140542 : f32
    %113 = vector.broadcast %cst_38 : f32 to vector<16x128xf32>
    %114 = arith.mulf %113, %112 : vector<16x128xf32>
    %cst_39 = arith.constant -1.45315206 : f32
    %115 = vector.broadcast %cst_39 : f32 to vector<16x128xf32>
    %116 = arith.addf %114, %115 : vector<16x128xf32>
    %117 = arith.mulf %116, %112 : vector<16x128xf32>
    %cst_40 = arith.constant 1.42141378 : f32
    %118 = vector.broadcast %cst_40 : f32 to vector<16x128xf32>
    %119 = arith.addf %117, %118 : vector<16x128xf32>
    %120 = arith.mulf %119, %112 : vector<16x128xf32>
    %cst_41 = arith.constant -0.284496725 : f32
    %121 = vector.broadcast %cst_41 : f32 to vector<16x128xf32>
    %122 = arith.addf %120, %121 : vector<16x128xf32>
    %123 = arith.mulf %122, %112 : vector<16x128xf32>
    %cst_42 = arith.constant 0.254829586 : f32
    %124 = vector.broadcast %cst_42 : f32 to vector<16x128xf32>
    %125 = arith.addf %123, %124 : vector<16x128xf32>
    %126 = arith.mulf %125, %112 : vector<16x128xf32>
    %cst_43 = arith.constant 0.000000e+00 : f32
    %127 = vector.broadcast %cst_43 : f32 to vector<16x128xf32>
    %128 = arith.subf %127, %106 : vector<16x128xf32>
    %129 = arith.mulf %128, %106 : vector<16x128xf32>
    %130 = math.exp %129 : vector<16x128xf32>
    %131 = arith.mulf %126, %130 : vector<16x128xf32>
    %cst_44 = arith.constant 1.000000e+00 : f32
    %132 = vector.broadcast %cst_44 : f32 to vector<16x128xf32>
    %133 = arith.subf %132, %131 : vector<16x128xf32>
    %cst_45 = arith.constant 0.000000e+00 : f32
    %134 = vector.broadcast %cst_45 : f32 to vector<16x128xf32>
    %135 = arith.cmpf olt, %105, %134 : vector<16x128xf32>
    %cst_46 = arith.constant 0.000000e+00 : f32
    %136 = vector.broadcast %cst_46 : f32 to vector<16x128xf32>
    %137 = arith.subf %136, %133 : vector<16x128xf32>
    %138 = arith.select %135, %137, %133 : vector<16x128xi1>, vector<16x128xf32>
    %cst_47 = arith.constant 1.000000e+00 : f32
    %139 = vector.broadcast %cst_47 : f32 to vector<16x128xf32>
    %140 = arith.addf %139, %138 : vector<16x128xf32>
    %141 = arith.mulf %103, %140 : vector<16x128xf32>
    %142 = vector.broadcast %8 : vector<16x1xf32> to vector<16x128xf32>
    %143 = arith.mulf %141, %142 : vector<16x128xf32>
    %cst_48 = arith.constant dense<0.000000e+00> : vector<128xf32>
    %144 = vector.multi_reduction <add>, %143, %cst_48 [0] : vector<16x128xf32> to vector<128xf32>
    %145 = vector.shape_cast %144 : vector<128xf32> to vector<1x128xf32>
    %146 = vector.broadcast %9 : vector<1x1xf32> to vector<1x128xf32>
    %147 = arith.addf %145, %146 : vector<1x128xf32>
    %c0_49 = arith.constant 0 : index
    %c0_50 = arith.constant 0 : index
    %148 = vector.load %arg5[%c0_49, %c0_50] : memref<1x128xf32, #tpu.memory_space<vmem>>, vector<1x128xf32>
    tpu.vector_store %arg5[%c0_49, %c0_50], %147 {strides = array<i32>} : memref<1x128xf32, #tpu.memory_space<vmem>>, vector<1x128xf32>,
    return
  }
  func.func @transform_0(%arg0: i32) -> (i32, i32) {
    %c0_i32 = arith.constant 0 : i32
    %c0_i32_0 = arith.constant 0 : i32
    return %arg0, %c0_i32 : i32, i32
  }
  func.func @transform_1(%arg0: i32) -> (i32, i32) {
    %c0_i32 = arith.constant 0 : i32
    %c0_i32_0 = arith.constant 0 : i32
    %c0_i32_1 = arith.constant 0 : i32
    return %c0_i32, %c0_i32_0 : i32, i32
  }
  func.func @transform_2(%arg0: i32) -> (i32, i32) {
    %c0_i32 = arith.constant 0 : i32
    %c0_i32_0 = arith.constant 0 : i32
    %c0_i32_1 = arith.constant 0 : i32
    return %c0_i32, %c0_i32_0 : i32, i32
  }
  func.func @transform_3(%arg0: i32) -> (i32, i32) {
    %c0_i32 = arith.constant 0 : i32
    %c0_i32_0 = arith.constant 0 : i32
    %c0_i32_1 = arith.constant 0 : i32
    return %c0_i32, %c0_i32_0 : i32, i32
  }
  func.func @transform_4(%arg0: i32) -> (i32, i32) {
    %c0_i32 = arith.constant 0 : i32
    %c0_i32_0 = arith.constant 0 : i32
    return %c0_i32, %arg0 : i32, i32
  }
}

</mosaic_0001>

<llo_original>
// kernel: tpu_custom_call.1
$region0: #{tpu_custom_call.1}
  #allocation0 [shape = 'u32[]', space=smem, size = 0x4, offset = 0x4, fixed_abs, tag = 'smem constant byte address 0x4 - core index']
  #allocation1 [shape = 'u32[144,128]{1,0:T(1,128)}', space=vmem, size = 0x12000, scoped, tag = 'internal scratch']
  %s0 = inlined_call_operand.vmem [shape: f32[128,25], index: 0, kind: input, shape index: {}]
  %s1 = inlined_call_operand.vmem [shape: f32[64,25], index: 1, kind: input, shape index: {}]
  %s2 = inlined_call_operand.vmem [shape: f32[16,64], index: 2, kind: input, shape index: {}]
  %s3 = inlined_call_operand.vmem [shape: f32[64,8], index: 3, kind: input, shape index: {}]
  %s4 = inlined_call_operand.hbm [shape: f32[1,128], index: 4, kind: output, shape index: {}]
  %s5 = sld [smem:[#allocation0]]
  $region26: #{tpu_custom_call.1} parent=0
    _
  %s7 = ssub.s32 1, %s5
  %s8 = scalar_select 0, %s7, %s5
  $region1: #{tpu_custom_call.1} parent=0
    #allocation2 [shape = 'u8[512]{0}', space=vmem, size = 0x400, scoped, tag = 'output window, operand 0, single buffered']
    #allocation3 [shape = 's32[1]{0}', space=sflag, size = 0x4, scoped, tag = 'scoped memory for tpu_custom_call.1']
    %9 = vsyncpa [#allocation3], 0
    // Predicated region
    $region2: #{tpu_custom_call.1} parent=1 // pred_check
      _
    $region3: #{tpu_custom_call.1} parent=1 // pred_check_branch
      %11 = sbr.rel (0) target = $region5
    $region4: #{tpu_custom_call.1} parent=1 // pred_region
      _
    $region5: #{tpu_custom_call.1} parent=1 // pred_fallthru
      _
    // Predicated region
    $region6: #{tpu_custom_call.1} parent=1 // pred_check
      _
    $region7: #{tpu_custom_call.1} parent=1 // pred_check_branch
      %13 = sbr.rel (0) target = $region9
    $region8: #{tpu_custom_call.1} parent=1 // pred_region
      _
    $region9: #{tpu_custom_call.1} parent=1 // pred_fallthru
      _
    // Predicated region
    $region10: #{tpu_custom_call.1} parent=1 // pred_check
      _
    $region11: #{tpu_custom_call.1} parent=1 // pred_check_branch
      %15 = sbr.rel (0) target = $region13
    $region12: #{tpu_custom_call.1} parent=1 // pred_region
      _
    $region13: #{tpu_custom_call.1} parent=1 // pred_fallthru
      _
    // Predicated region
    $region14: #{tpu_custom_call.1} parent=1 // pred_check
      _
    $region15: #{tpu_custom_call.1} parent=1 // pred_check_branch
      %17 = sbr.rel (0) target = $region17
    $region16: #{tpu_custom_call.1} parent=1 // pred_region
      _
    $region17: #{tpu_custom_call.1} parent=1 // pred_fallthru
      _
    %v18 = vld [vmem:[%s0] sm:$0xff]
    %v19 = vld [vmem:[%s0 + $0x8] sm:$0xff]
    %v20 = vld [vmem:[%s0 + $0x10] sm:$0xff]
    %v21 = vld [vmem:[%s0 + $0x18] sm:$0xff]
    %v22 = vld [vmem:[%s0 + $0x20] sm:$0xff]
    %v23 = vld [vmem:[%s0 + $0x28] sm:$0xff]
    %v24 = vld [vmem:[%s0 + $0x30] sm:$0xff]
    %v25 = vld [vmem:[%s0 + $0x38] sm:$0xff]
    %v26 = vld [vmem:[%s0 + $0x40] sm:$0xff]
    %v27 = vld [vmem:[%s0 + $0x48] sm:$0xff]
    %v28 = vld [vmem:[%s0 + $0x50] sm:$0xff]
    %v29 = vld [vmem:[%s0 + $0x58] sm:$0xff]
    %v30 = vld [vmem:[%s0 + $0x60] sm:$0xff]
    %v31 = vld [vmem:[%s0 + $0x68] sm:$0xff]
    %v32 = vld [vmem:[%s0 + $0x70] sm:$0xff]
    %v33 = vld [vmem:[%s0 + $0x78] sm:$0xff]
    %v34 = vld [vmem:[%s3] sm:$0xff]
    %v35 = vld [vmem:[%s3 + $0x8] sm:$0xff]
    %v36 = vld [vmem:[%s3 + $0x10] sm:$0xff]
    %v37 = vld [vmem:[%s3 + $0x18] sm:$0xff]
    %v38 = vld [vmem:[%s3 + $0x20] sm:$0xff]
    %v39 = vld [vmem:[%s3 + $0x28] sm:$0xff]
    %v40 = vld [vmem:[%s3 + $0x30] sm:$0xff]
    %v41 = vld [vmem:[%s3 + $0x38] sm:$0xff]
    %v42 = vld [vmem:[%s1] sm:$0xff]
    %v43 = vld [vmem:[%s1 + $0x8] sm:$0xff]
    %v44 = vld [vmem:[%s1 + $0x10] sm:$0xff]
    %v45 = vld [vmem:[%s1 + $0x18] sm:$0xff]
    %v46 = vld [vmem:[%s1 + $0x20] sm:$0xff]
    %v47 = vld [vmem:[%s1 + $0x28] sm:$0xff]
    %v48 = vld [vmem:[%s1 + $0x30] sm:$0xff]
    %v49 = vld [vmem:[%s1 + $0x38] sm:$0xff]
    %51 = vset.pattern.permute.xlu0 0
    %52 = vperm.xlu0 %51, %v34
    %v53 = vpop.permute.xlu0 %52
    %56 = vset.pattern.permute.xlu0 0
    %57 = vperm.xlu0 %56, %v35
    %v58 = vpop.permute.xlu0 %57
    %61 = vset.pattern.permute.xlu0 0
    %62 = vperm.xlu0 %61, %v36
    %v63 = vpop.permute.xlu0 %62
    %66 = vset.pattern.permute.xlu0 0
    %67 = vperm.xlu0 %66, %v37
    %v68 = vpop.permute.xlu0 %67
    %71 = vset.pattern.permute.xlu0 0
    %72 = vperm.xlu0 %71, %v38
    %v73 = vpop.permute.xlu0 %72
    %76 = vset.pattern.permute.xlu0 0
    %77 = vperm.xlu0 %76, %v39
    %v78 = vpop.permute.xlu0 %77
    %81 = vset.pattern.permute.xlu0 0
    %82 = vperm.xlu0 %81, %v40
    %v83 = vpop.permute.xlu0 %82
    %86 = vset.pattern.permute.xlu0 0
    %87 = vperm.xlu0 %86, %v41
    %v88 = vpop.permute.xlu0 %87
    %vm90 = vcmask 203776
    %v92 = vsel %vm90, %v42, 0
    %v95 = vsel %vm90, %v43, 0
    %v98 = vsel %vm90, %v44, 0
    %v101 = vsel %vm90, %v45, 0
    %v104 = vsel %vm90, %v46, 0
    %v107 = vsel %vm90, %v47, 0
    %v110 = vsel %vm90, %v48, 0
    %v113 = vsel %vm90, %v49, 0
    %v116 = vsel %vm90, %v18, 0
    %v119 = vsel %vm90, %v19, 0
    %v122 = vsel %vm90, %v20, 0
    %v125 = vsel %vm90, %v21, 0
    %v128 = vsel %vm90, %v22, 0
    %v131 = vsel %vm90, %v23, 0
    %v134 = vsel %vm90, %v24, 0
    %v137 = vsel %vm90, %v25, 0
    %v140 = vsel %vm90, %v26, 0
    %v143 = vsel %vm90, %v27, 0
    %v146 = vsel %vm90, %v28, 0
    %v149 = vsel %vm90, %v29, 0
    %v152 = vsel %vm90, %v30, 0
    %v155 = vsel %vm90, %v31, 0
    %v158 = vsel %vm90, %v32, 0
    %v161 = vsel %vm90, %v33, 0
    %163 = vmatprep.subr.mxu0 0.0
    %164 = vmatpush1.xpose.msra.mxu0 %v116
    %165 = vmatprep.subr.mxu0 0.0
    %166 = vmatpush1.xpose.msra.mxu0 %v119
    %167 = vmatprep.subr.mxu0 0.0
    %168 = vmatpush1.xpose.msra.mxu0 %v122
    %169 = vmatprep.subr.mxu0 0.0
    %170 = vmatpush1.xpose.msra.mxu0 %v125
    %171 = vmatprep.subr.mxu0 0.0
    %172 = vmatpush1.xpose.msra.mxu0 %v128
    %173 = vmatprep.subr.mxu0 0.0
    %174 = vmatpush1.xpose.msra.mxu0 %v131
    %175 = vmatprep.subr.mxu0 0.0
    %176 = vmatpush1.xpose.msra.mxu0 %v134
    %177 = vmatprep.subr.mxu0 0.0
    %178 = vmatpush1.xpose.msra.mxu0 %v137
    %179 = vmatprep.subr.mxu0 0.0
    %180 = vmatpush1.xpose.msra.mxu0 %v140
    %181 = vmatprep.subr.mxu0 0.0
    %182 = vmatpush1.xpose.msra.mxu0 %v143
    %183 = vmatprep.subr.mxu0 0.0
    %184 = vmatpush1.xpose.msra.mxu0 %v146
    %185 = vmatprep.subr.mxu0 0.0
    %186 = vmatpush1.xpose.msra.mxu0 %v149
    %187 = vmatprep.subr.mxu0 0.0
    %188 = vmatpush1.xpose.msra.mxu0 %v152
    %189 = vmatprep.subr.mxu0 0.0
    %190 = vmatpush1.xpose.msra.mxu0 %v155
    %191 = vmatprep.subr.mxu0 0.0
    %192 = vmatpush1.xpose.msra.mxu0 %v158
    %193 = vmatprep.subr.mxu0 0.0
    %194 = vmatpush1.xpose.msra.mxu0 %v161
    %195 = vmatprep.subr.mxu0 0.0
    %196 = vmatpush1.xpose.msra.mxu0 0.0
    %197 = vmatprep.subr.mxu0 0.0
    %198 = vmatpush1.xpose.msra.mxu0 0.0
    %199 = vmatprep.subr.mxu0 0.0
    %200 = vmatpush1.xpose.msra.mxu0 0.0
    %201 = vmatprep.subr.mxu0 0.0
    %202 = vmatpush1.xpose.msra.mxu0 0.0
    %203 = vmatprep.subr.mxu0 0.0
    %204 = vmatpush1.xpose.msra.mxu0 0.0
    %205 = vmatprep.subr.mxu0 0.0
    %206 = vmatpush1.xpose.msra.mxu0 0.0
    %207 = vmatprep.subr.mxu0 0.0
    %208 = vmatpush1.xpose.msra.mxu0 0.0
    %209 = vmatprep.subr.mxu0 0.0
    %210 = vmatpush1.xpose.msra.mxu0 0.0
    %211 = vmatprep.subr.mxu0 0.0
    %212 = vmatpush1.xpose.msra.mxu0 0.0
    %213 = vmatprep.subr.mxu0 0.0
    %214 = vmatpush1.xpose.msra.mxu0 0.0
    %215 = vmatprep.subr.mxu0 0.0
    %216 = vmatpush1.xpose.msra.mxu0 0.0
    %217 = vmatprep.subr.mxu0 0.0
    %218 = vmatpush1.xpose.msra.mxu0 0.0
    %219 = vmatprep.subr.mxu0 0.0
    %220 = vmatpush1.xpose.msra.mxu0 0.0
    %221 = vmatprep.subr.mxu0 0.0
    %222 = vmatpush1.xpose.msra.mxu0 0.0
    %223 = vmatprep.subr.mxu0 0.0
    %224 = vmatpush1.xpose.msra.mxu0 0.0
    %225 = vmatprep.subr.mxu0 0.0
    %226 = vmatpush1.xpose.msra.mxu0 0.0
    %227 = vmatprep.mubr.f32.mxu0 0.0
    %228 = vmatmul.mubr.f32.gmra.mrb[0].mxu0 %v92
    %v229 = vpop.f32.mrb[0].mxu0
    %v230 = vadd.f32 %v53, %v229
    %v231 = vpop.f32.mrb[0].mxu0
    %232 = vmatprep.mubr.f32.mxu0 0.0
    %233 = vmatmul.mubr.f32.gmra.mrb[0].mxu0 %v95
    %v234 = vpop.f32.mrb[0].mxu0
    %v235 = vadd.f32 %v58, %v234
    %v236 = vpop.f32.mrb[0].mxu0
    %237 = vmatprep.mubr.f32.mxu0 0.0
    %238 = vmatmul.mubr.f32.gmra.mrb[0].mxu0 %v98
    %v239 = vpop.f32.mrb[0].mxu0
    %v240 = vadd.f32 %v63, %v239
    %v241 = vpop.f32.mrb[0].mxu0
    %242 = vmatprep.mubr.f32.mxu0 0.0
    %243 = vmatmul.mubr.f32.gmra.mrb[0].mxu0 %v101
    %v244 = vpop.f32.mrb[0].mxu0
    %v245 = vadd.f32 %v68, %v244
    %v246 = vpop.f32.mrb[0].mxu0
    %247 = vmatprep.mubr.f32.mxu0 0.0
    %248 = vmatmul.mubr.f32.gmra.mrb[0].mxu0 %v104
    %v249 = vpop.f32.mrb[0].mxu0
    %v250 = vadd.f32 %v73, %v249
    %v251 = vpop.f32.mrb[0].mxu0
    %252 = vmatprep.mubr.f32.mxu0 0.0
    %253 = vmatmul.mubr.f32.gmra.mrb[0].mxu0 %v107
    %v254 = vpop.f32.mrb[0].mxu0
    %v255 = vadd.f32 %v78, %v254
    %v256 = vpop.f32.mrb[0].mxu0
    %257 = vmatprep.mubr.f32.mxu0 0.0
    %258 = vmatmul.mubr.f32.gmra.mrb[0].mxu0 %v110
    %v259 = vpop.f32.mrb[0].mxu0
    %v260 = vadd.f32 %v83, %v259
    %v261 = vpop.f32.mrb[0].mxu0
    %262 = vmatprep.mubr.f32.mxu0 0.0
    %263 = vmatmul.mubr.f32.gmra.mrb[0].mxu0 %v113
    %v264 = vpop.f32.mrb[0].mxu0
    %v265 = vadd.f32 %v88, %v264
    %v266 = vpop.f32.mrb[0].mxu0
    %267 = vdwg.mxu0
    %v268 = vadd.f32 %v230, %v235
    %v269 = vadd.f32 %v268, %v240
    %v270 = vadd.f32 %v269, %v245
    %v271 = vadd.f32 %v270, %v250
    %v272 = vadd.f32 %v271, %v255
    %v273 = vadd.f32 %v272, %v260
    %v274 = vadd.f32 %v273, %v265
    %v275 = vrot.slane %v274, 4
    %v276 = vadd.f32 %v274, %v275
    %v277 = vrot.slane %v276, 2
    %v278 = vadd.f32 %v276, %v277
    %v279 = vrot.slane %v278, 1
    %v280 = vadd.f32 %v278, %v279
    %v281 = vrcp.pop 64.0
    %v282 = vmul.f32 %v280, %v281
    %v283 = vmul.f32 %v230, %v230
    %v284 = vmul.f32 %v235, %v235
    %v285 = vmul.f32 %v240, %v240
    %v286 = vmul.f32 %v245, %v245
    %v287 = vmul.f32 %v250, %v250
    %v288 = vmul.f32 %v255, %v255
    %v289 = vmul.f32 %v260, %v260
    %v290 = vmul.f32 %v265, %v265
    %v291 = vadd.f32 %v283, %v284
    %v292 = vadd.f32 %v291, %v285
    %v293 = vadd.f32 %v292, %v286
    %v294 = vadd.f32 %v293, %v287
    %v295 = vadd.f32 %v294, %v288
    %v296 = vadd.f32 %v295, %v289
    %v297 = vadd.f32 %v296, %v290
    %v298 = vrot.slane %v297, 4
    %v299 = vadd.f32 %v297, %v298
    %v300 = vrot.slane %v299, 2
    %v301 = vadd.f32 %v299, %v300
    %v302 = vrot.slane %v301, 1
    %v303 = vadd.f32 %v301, %v302
    %v304 = vmul.f32 %v303, %v281
    %v305 = vmul.f32 %v282, %v282
    %v306 = vsub.f32 %v304, %v305
    %v307 = vsub.f32 %v230, %v282
    %v308 = vsub.f32 %v235, %v282
    %v309 = vsub.f32 %v240, %v282
    %v310 = vsub.f32 %v245, %v282
    %v311 = vsub.f32 %v250, %v282
    %v312 = vsub.f32 %v255, %v282
    %v313 = vsub.f32 %v260, %v282
    %v314 = vsub.f32 %v265, %v282
    %v315 = vadd.f32 %v306, 1e-05
    %v316 = vrsqrt.pop %v315
    %v317 = vmul.f32 %v307, %v316
    %v318 = vmul.f32 %v308, %v316
    %v319 = vmul.f32 %v309, %v316
    %v320 = vmul.f32 %v310, %v316
    %v321 = vmul.f32 %v311, %v316
    %v322 = vmul.f32 %v312, %v316
    %v323 = vmul.f32 %v313, %v316
    %v324 = vmul.f32 %v314, %v316
    %325 = vset.pattern.permute.xlu0 1
    %326 = vperm.xlu0 %325, %v34
    %v327 = vpop.permute.xlu0 %326
    %329 = vset.pattern.permute.xlu0 1
    %330 = vperm.xlu0 %329, %v35
    %v331 = vpop.permute.xlu0 %330
    %333 = vset.pattern.permute.xlu0 1
    %334 = vperm.xlu0 %333, %v36
    %v335 = vpop.permute.xlu0 %334
    %337 = vset.pattern.permute.xlu0 1
    %338 = vperm.xlu0 %337, %v37
    %v339 = vpop.permute.xlu0 %338
    %341 = vset.pattern.permute.xlu0 1
    %342 = vperm.xlu0 %341, %v38
    %v343 = vpop.permute.xlu0 %342
    %345 = vset.pattern.permute.xlu0 1
    %346 = vperm.xlu0 %345, %v39
    %v347 = vpop.permute.xlu0 %346
    %349 = vset.pattern.permute.xlu0 1
    %350 = vperm.xlu0 %349, %v40
    %v351 = vpop.permute.xlu0 %350
    %353 = vset.pattern.permute.xlu0 1
    %354 = vperm.xlu0 %353, %v41
    %v355 = vpop.permute.xlu0 %354
    %v357 = vmul.f32 %v317, %v327
    %v358 = vmul.f32 %v318, %v331
    %v359 = vmul.f32 %v319, %v335
    %v360 = vmul.f32 %v320, %v339
    %v361 = vmul.f32 %v321, %v343
    %v362 = vmul.f32 %v322, %v347
    %v363 = vmul.f32 %v323, %v351
    %v364 = vmul.f32 %v324, %v355
    %365 = vset.pattern.permute.xlu0 2
    %366 = vperm.xlu0 %365, %v34
    %v367 = vpop.permute.xlu0 %366
    %369 = vset.pattern.permute.xlu0 2
    %370 = vperm.xlu0 %369, %v35
    %v371 = vpop.permute.xlu0 %370
    %373 = vset.pattern.permute.xlu0 2
    %374 = vperm.xlu0 %373, %v36
    %v375 = vpop.permute.xlu0 %374
    %377 = vset.pattern.permute.xlu0 2
    %378 = vperm.xlu0 %377, %v37
    %v379 = vpop.permute.xlu0 %378
    %381 = vset.pattern.permute.xlu0 2
    %382 = vperm.xlu0 %381, %v38
    %v383 = vpop.permute.xlu0 %382
    %385 = vset.pattern.permute.xlu0 2
    %386 = vperm.xlu0 %385, %v39
    %v387 = vpop.permute.xlu0 %386
    %389 = vset.pattern.permute.xlu0 2
    %390 = vperm.xlu0 %389, %v40
    %v391 = vpop.permute.xlu0 %390
    %393 = vset.pattern.permute.xlu0 2
    %394 = vperm.xlu0 %393, %v41
    %v395 = vpop.permute.xlu0 %394
    %v397 = vadd.f32 %v357, %v367
    %v398 = vadd.f32 %v358, %v371
    %v399 = vadd.f32 %v359, %v375
    %v400 = vadd.f32 %v360, %v379
    %v401 = vadd.f32 %v361, %v383
    %v402 = vadd.f32 %v362, %v387
    %v403 = vadd.f32 %v363, %v391
    %v404 = vadd.f32 %v364, %v395
    %v405 = vmul.f32 %v397, 0.5
    %v406 = vmul.f32 %v398, 0.5
    %v407 = vmul.f32 %v399, 0.5
    %v408 = vmul.f32 %v400, 0.5
    %v409 = vmul.f32 %v401, 0.5
    %v410 = vmul.f32 %v402, 0.5
    %v411 = vmul.f32 %v403, 0.5
    %v412 = vmul.f32 %v404, 0.5
    %v413 = vmul.f32 %v397, 0.70710677
    %v414 = vmul.f32 %v398, 0.70710677
    %v415 = vmul.f32 %v399, 0.70710677
    %v416 = vmul.f32 %v400, 0.70710677
    %v417 = vmul.f32 %v401, 0.70710677
    %v418 = vmul.f32 %v402, 0.70710677
    %v419 = vmul.f32 %v403, 0.70710677
    %v420 = vmul.f32 %v404, 0.70710677
    %v421 = vand.u32 2147483647, %v413
    %v422 = vand.u32 2147483647, %v414
    %v423 = vand.u32 2147483647, %v415
    %v424 = vand.u32 2147483647, %v416
    %v425 = vand.u32 2147483647, %v417
    %v426 = vand.u32 2147483647, %v418
    %v427 = vand.u32 2147483647, %v419
    %v428 = vand.u32 2147483647, %v420
    %v429 = vmul.f32 %v421, 0.3275911
    %v430 = vmul.f32 %v422, 0.3275911
    %v431 = vmul.f32 %v423, 0.3275911
    %v432 = vmul.f32 %v424, 0.3275911
    %v433 = vmul.f32 %v425, 0.3275911
    %v434 = vmul.f32 %v426, 0.3275911
    %v435 = vmul.f32 %v427, 0.3275911
    %v436 = vmul.f32 %v428, 0.3275911
    %v437 = vadd.f32 %v429, 1.0
    %v438 = vadd.f32 %v430, 1.0
    %v439 = vadd.f32 %v431, 1.0
    %v440 = vadd.f32 %v432, 1.0
    %v441 = vadd.f32 %v433, 1.0
    %v442 = vadd.f32 %v434, 1.0
    %v443 = vadd.f32 %v435, 1.0
    %v444 = vadd.f32 %v436, 1.0
    %v445 = vrcp.pop %v437
    %v446 = vmul.f32 1.0, %v445
    %v447 = vrcp.pop %v438
    %v448 = vmul.f32 1.0, %v447
    %v449 = vrcp.pop %v439
    %v450 = vmul.f32 1.0, %v449
    %v451 = vrcp.pop %v440
    %v452 = vmul.f32 1.0, %v451
    %v453 = vrcp.pop %v441
    %v454 = vmul.f32 1.0, %v453
    %v455 = vrcp.pop %v442
    %v456 = vmul.f32 1.0, %v455
    %v457 = vrcp.pop %v443
    %v458 = vmul.f32 1.0, %v457
    %v459 = vrcp.pop %v444
    %v460 = vmul.f32 1.0, %v459
    %v461 = vmul.f32 %v446, 1.0614054
    %v462 = vmul.f32 %v448, 1.0614054
    %v463 = vmul.f32 %v450, 1.0614054
    %v464 = vmul.f32 %v452, 1.0614054
    %v465 = vmul.f32 %v454, 1.0614054
    %v466 = vmul.f32 %v456, 1.0614054
    %v467 = vmul.f32 %v458, 1.0614054
    %v468 = vmul.f32 %v460, 1.0614054
    %v469 = vadd.f32 %v461, -1.4531521
    %v470 = vadd.f32 %v462, -1.4531521
    %v471 = vadd.f32 %v463, -1.4531521
    %v472 = vadd.f32 %v464, -1.4531521
    %v473 = vadd.f32 %v465, -1.4531521
    %v474 = vadd.f32 %v466, -1.4531521
    %v475 = vadd.f32 %v467, -1.4531521
    %v476 = vadd.f32 %v468, -1.4531521
    %v477 = vmul.f32 %v469, %v446
    %v478 = vmul.f32 %v470, %v448
    %v479 = vmul.f32 %v471, %v450
    %v480 = vmul.f32 %v472, %v452
    %v481 = vmul.f32 %v473, %v454
    %v482 = vmul.f32 %v474, %v456
    %v483 = vmul.f32 %v475, %v458
    %v484 = vmul.f32 %v476, %v460
    %v485 = vadd.f32 %v477, 1.4214138
    %v486 = vadd.f32 %v478, 1.4214138
    %v487 = vadd.f32 %v479, 1.4214138
    %v488 = vadd.f32 %v480, 1.4214138
    %v489 = vadd.f32 %v481, 1.4214138
    %v490 = vadd.f32 %v482, 1.4214138
    %v491 = vadd.f32 %v483, 1.4214138
    %v492 = vadd.f32 %v484, 1.4214138
    %v493 = vmul.f32 %v485, %v446
    %v494 = vmul.f32 %v486, %v448
    %v495 = vmul.f32 %v487, %v450
    %v496 = vmul.f32 %v488, %v452
    %v497 = vmul.f32 %v489, %v454
    %v498 = vmul.f32 %v490, %v456
    %v499 = vmul.f32 %v491, %v458
    %v500 = vmul.f32 %v492, %v460
    %v501 = vadd.f32 %v493, -0.28449672
    %v502 = vadd.f32 %v494, -0.28449672
    %v503 = vadd.f32 %v495, -0.28449672
    %v504 = vadd.f32 %v496, -0.28449672
    %v505 = vadd.f32 %v497, -0.28449672
    %v506 = vadd.f32 %v498, -0.28449672
    %v507 = vadd.f32 %v499, -0.28449672
    %v508 = vadd.f32 %v500, -0.28449672
    %v509 = vmul.f32 %v501, %v446
    %v510 = vmul.f32 %v502, %v448
    %v511 = vmul.f32 %v503, %v450
    %v512 = vmul.f32 %v504, %v452
    %v513 = vmul.f32 %v505, %v454
    %v514 = vmul.f32 %v506, %v456
    %v515 = vmul.f32 %v507, %v458
    %v516 = vmul.f32 %v508, %v460
    %v517 = vadd.f32 %v509, 0.2548296
    %v518 = vadd.f32 %v510, 0.2548296
    %v519 = vadd.f32 %v511, 0.2548296
    %v520 = vadd.f32 %v512, 0.2548296
    %v521 = vadd.f32 %v513, 0.2548296
    %v522 = vadd.f32 %v514, 0.2548296
    %v523 = vadd.f32 %v515, 0.2548296
    %v524 = vadd.f32 %v516, 0.2548296
    %v525 = vmul.f32 %v517, %v446
    %v526 = vmul.f32 %v518, %v448
    %v527 = vmul.f32 %v519, %v450
    %v528 = vmul.f32 %v520, %v452
    %v529 = vmul.f32 %v521, %v454
    %v530 = vmul.f32 %v522, %v456
    %v531 = vmul.f32 %v523, %v458
    %v532 = vmul.f32 %v524, %v460
    %v533 = vsub.f32 0.0, %v421
    %v534 = vsub.f32 0.0, %v422
    %v535 = vsub.f32 0.0, %v423
    %v536 = vsub.f32 0.0, %v424
    %v537 = vsub.f32 0.0, %v425
    %v538 = vsub.f32 0.0, %v426
    %v539 = vsub.f32 0.0, %v427
    %v540 = vsub.f32 0.0, %v428
    %v541 = vmul.f32 %v533, %v421
    %v542 = vmul.f32 %v534, %v422
    %v543 = vmul.f32 %v535, %v423
    %v544 = vmul.f32 %v536, %v424
    %v545 = vmul.f32 %v537, %v425
    %v546 = vmul.f32 %v538, %v426
    %v547 = vmul.f32 %v539, %v427
    %v548 = vmul.f32 %v540, %v428
    %v549 = vmul.f32 %v541, 1.442695
    %v550 = vpow.pop %v549
    %v551 = vmul.f32 %v542, 1.442695
    %v552 = vpow.pop %v551
    %v553 = vmul.f32 %v543, 1.442695
    %v554 = vpow.pop %v553
    %v555 = vmul.f32 %v544, 1.442695
    %v556 = vpow.pop %v555
    %v557 = vmul.f32 %v545, 1.442695
    %v558 = vpow.pop %v557
    %v559 = vmul.f32 %v546, 1.442695
    %v560 = vpow.pop %v559
    %v561 = vmul.f32 %v547, 1.442695
    %v562 = vpow.pop %v561
    %v563 = vmul.f32 %v548, 1.442695
    %v564 = vpow.pop %v563
    %v565 = vmul.f32 %v525, %v550
    %v566 = vmul.f32 %v526, %v552
    %v567 = vmul.f32 %v527, %v554
    %v568 = vmul.f32 %v528, %v556
    %v569 = vmul.f32 %v529, %v558
    %v570 = vmul.f32 %v530, %v560
    %v571 = vmul.f32 %v531, %v562
    %v572 = vmul.f32 %v532, %v564
    %v573 = vsub.f32 1.0, %v565
    %v574 = vsub.f32 1.0, %v566
    %v575 = vsub.f32 1.0, %v567
    %v576 = vsub.f32 1.0, %v568
    %v577 = vsub.f32 1.0, %v569
    %v578 = vsub.f32 1.0, %v570
    %v579 = vsub.f32 1.0, %v571
    %v580 = vsub.f32 1.0, %v572
    %vm581 = vcmp.lt.f32.partialorder %v413, 0.0
    %vm582 = vcmp.lt.f32.partialorder %v414, 0.0
    %vm583 = vcmp.lt.f32.partialorder %v415, 0.0
    %vm584 = vcmp.lt.f32.partialorder %v416, 0.0
    %vm585 = vcmp.lt.f32.partialorder %v417, 0.0
    %vm586 = vcmp.lt.f32.partialorder %v418, 0.0
    %vm587 = vcmp.lt.f32.partialorder %v419, 0.0
    %vm588 = vcmp.lt.f32.partialorder %v420, 0.0
    %v589 = vsub.f32 0.0, %v573
    %v590 = vsub.f32 0.0, %v574
    %v591 = vsub.f32 0.0, %v575
    %v592 = vsub.f32 0.0, %v576
    %v593 = vsub.f32 0.0, %v577
    %v594 = vsub.f32 0.0, %v578
    %v595 = vsub.f32 0.0, %v579
    %v596 = vsub.f32 0.0, %v580
    %v597 = vsel %vm581, %v589, %v573
    %v598 = vsel %vm582, %v590, %v574
    %v599 = vsel %vm583, %v591, %v575
    %v600 = vsel %vm584, %v592, %v576
    %v601 = vsel %vm585, %v593, %v577
    %v602 = vsel %vm586, %v594, %v578
    %v603 = vsel %vm587, %v595, %v579
    %v604 = vsel %vm588, %v596, %v580
    %v605 = vadd.f32 %v597, 1.0
    %v606 = vadd.f32 %v598, 1.0
    %v607 = vadd.f32 %v599, 1.0
    %v608 = vadd.f32 %v600, 1.0
    %v609 = vadd.f32 %v601, 1.0
    %v610 = vadd.f32 %v602, 1.0
    %v611 = vadd.f32 %v603, 1.0
    %v612 = vadd.f32 %v604, 1.0
    %v613 = vmul.f32 %v405, %v605
    %v614 = vmul.f32 %v406, %v606
    %v615 = vmul.f32 %v407, %v607
    %v616 = vmul.f32 %v408, %v608
    %v617 = vmul.f32 %v409, %v609
    %v618 = vmul.f32 %v410, %v610
    %v619 = vmul.f32 %v411, %v611
    %v620 = vmul.f32 %v412, %v612
    %v621 = vld [vmem:[%s2] sm:$0xff]
    %v622 = vld [vmem:[%s2 + $0x8] sm:$0xff]
    %623 = vset.pattern.permute.xlu0 3
    %624 = vperm.xlu0 %623, %v34
    %v625 = vpop.permute.xlu0 %624
    %627 = vset.pattern.permute.xlu0 3
    %628 = vperm.xlu0 %627, %v35
    %v629 = vpop.permute.xlu0 %628
    %vm631 = vcmask 523264
    %v633 = vsel %vm631, %v621, 0
    %v636 = vsel %vm631, %v622, 0
    %638 = vmatprep.subr.mxu0 0.0
    %639 = vmatpush1.msra.mxu0 %v613
    %640 = vmatprep.subr.mxu0 0.0
    %641 = vmatpush1.msra.mxu0 %v614
    %642 = vmatprep.subr.mxu0 0.0
    %643 = vmatpush1.msra.mxu0 %v615
    %644 = vmatprep.subr.mxu0 0.0
    %645 = vmatpush1.msra.mxu0 %v616
    %646 = vmatprep.subr.mxu0 0.0
    %647 = vmatpush1.msra.mxu0 %v617
    %648 = vmatprep.subr.mxu0 0.0
    %649 = vmatpush1.msra.mxu0 %v618
    %650 = vmatprep.subr.mxu0 0.0
    %651 = vmatpush1.msra.mxu0 %v619
    %652 = vmatprep.subr.mxu0 0.0
    %653 = vmatpush1.msra.mxu0 %v620
    %654 = vmatprep.subr.mxu0 0.0
    %655 = vmatpush1.msra.mxu0 0.0
    %656 = vmatprep.subr.mxu0 0.0
    %657 = vmatpush1.msra.mxu0 0.0
    %658 = vmatprep.subr.mxu0 0.0
    %659 = vmatpush1.msra.mxu0 0.0
    %660 = vmatprep.subr.mxu0 0.0
    %661 = vmatpush1.msra.mxu0 0.0
    %662 = vmatprep.subr.mxu0 0.0
    %663 = vmatpush1.msra.mxu0 0.0
    %664 = vmatprep.subr.mxu0 0.0
    %665 = vmatpush1.msra.mxu0 0.0
    %666 = vmatprep.subr.mxu0 0.0
    %667 = vmatpush1.msra.mxu0 0.0
    %668 = vmatprep.subr.mxu0 0.0
    %669 = vmatpush1.msra.mxu0 0.0
    %670 = vmatprep.subr.mxu0 0.0
    %671 = vmatpush1.msra.mxu0 0.0
    %672 = vmatprep.subr.mxu0 0.0
    %673 = vmatpush1.msra.mxu0 0.0
    %674 = vmatprep.subr.mxu0 0.0
    %675 = vmatpush1.msra.mxu0 0.0
    %676 = vmatprep.subr.mxu0 0.0
    %677 = vmatpush1.msra.mxu0 0.0
    %678 = vmatprep.subr.mxu0 0.0
    %679 = vmatpush1.msra.mxu0 0.0
    %680 = vmatprep.subr.mxu0 0.0
    %681 = vmatpush1.msra.mxu0 0.0
    %682 = vmatprep.subr.mxu0 0.0
    %683 = vmatpush1.msra.mxu0 0.0
    %684 = vmatprep.subr.mxu0 0.0
    %685 = vmatpush1.msra.mxu0 0.0
    %686 = vmatprep.subr.mxu0 0.0
    %687 = vmatpush1.msra.mxu0 0.0
    %688 = vmatprep.subr.mxu0 0.0
    %689 = vmatpush1.msra.mxu0 0.0
    %690 = vmatprep.subr.mxu0 0.0
    %691 = vmatpush1.msra.mxu0 0.0
    %692 = vmatprep.subr.mxu0 0.0
    %693 = vmatpush1.msra.mxu0 0.0
    %694 = vmatprep.subr.mxu0 0.0
    %695 = vmatpush1.msra.mxu0 0.0
    %696 = vmatprep.subr.mxu0 0.0
    %697 = vmatpush1.msra.mxu0 0.0
    %698 = vmatprep.subr.mxu0 0.0
    %699 = vmatpush1.msra.mxu0 0.0
    %700 = vmatprep.subr.mxu0 0.0
    %701 = vmatpush1.msra.mxu0 0.0
    %702 = vmatprep.mubr.f32.mxu0 0.0
    %703 = vmatmul.mubr.f32.gmra.mrb[0].mxu0 %v633
    %v704 = vpop.f32.mrb[0].mxu0
    %v705 = vadd.f32 %v625, %v704
    %v706 = vpop.f32.mrb[0].mxu0
    %707 = vmatprep.mubr.f32.mxu0 0.0
    %708 = vmatmul.mubr.f32.gmra.mrb[0].mxu0 %v636
    %v709 = vpop.f32.mrb[0].mxu0
    %v710 = vadd.f32 %v629, %v709
    %v711 = vpop.f32.mrb[0].mxu0
    %712 = vdwg.mxu0
    %v713 = vadd.f32 %v705, %v710
    %v714 = vrot.slane %v713, 4
    %v715 = vadd.f32 %v713, %v714
    %v716 = vrot.slane %v715, 2
    %v717 = vadd.f32 %v715, %v716
    %v718 = vrot.slane %v717, 1
    %v719 = vadd.f32 %v717, %v718
    %v720 = vrcp.pop 16.0
    %v721 = vmul.f32 %v719, %v720
    %v722 = vmul.f32 %v705, %v705
    %v723 = vmul.f32 %v710, %v710
    %v724 = vadd.f32 %v722, %v723
    %v725 = vrot.slane %v724, 4
    %v726 = vadd.f32 %v724, %v725
    %v727 = vrot.slane %v726, 2
    %v728 = vadd.f32 %v726, %v727
    %v729 = vrot.slane %v728, 1
    %v730 = vadd.f32 %v728, %v729
    %v731 = vmul.f32 %v730, %v720
    %v732 = vmul.f32 %v721, %v721
    %v733 = vsub.f32 %v731, %v732
    %v734 = vsub.f32 %v705, %v721
    %v735 = vsub.f32 %v710, %v721
    %v736 = vadd.f32 %v733, 1e-05
    %v737 = vrsqrt.pop %v736
    %v738 = vmul.f32 %v734, %v737
    %v739 = vmul.f32 %v735, %v737
    %740 = vset.pattern.permute.xlu0 4
    %741 = vperm.xlu0 %740, %v34
    %v742 = vpop.permute.xlu0 %741
    %744 = vset.pattern.permute.xlu0 4
    %745 = vperm.xlu0 %744, %v35
    %v746 = vpop.permute.xlu0 %745
    %v748 = vmul.f32 %v738, %v742
    %v749 = vmul.f32 %v739, %v746
    %750 = vset.pattern.permute.xlu0 5
    %751 = vperm.xlu0 %750, %v34
    %v752 = vpop.permute.xlu0 %751
    %754 = vset.pattern.permute.xlu0 5
    %755 = vperm.xlu0 %754, %v35
    %v756 = vpop.permute.xlu0 %755
    %v758 = vadd.f32 %v748, %v752
    %v759 = vadd.f32 %v749, %v756
    %v760 = vmul.f32 %v758, 0.5
    %v761 = vmul.f32 %v759, 0.5
    %v762 = vmul.f32 %v758, 0.70710677
    %v763 = vmul.f32 %v759, 0.70710677
    %v764 = vand.u32 2147483647, %v762
    %v765 = vand.u32 2147483647, %v763
    %v766 = vmul.f32 %v764, 0.3275911
    %v767 = vmul.f32 %v765, 0.3275911
    %v768 = vadd.f32 %v766, 1.0
    %v769 = vadd.f32 %v767, 1.0
    %v770 = vrcp.pop %v768
    %v771 = vmul.f32 1.0, %v770
    %v772 = vrcp.pop %v769
    %v773 = vmul.f32 1.0, %v772
    %v774 = vmul.f32 %v771, 1.0614054
    %v775 = vmul.f32 %v773, 1.0614054
    %v776 = vadd.f32 %v774, -1.4531521
    %v777 = vadd.f32 %v775, -1.4531521
    %v778 = vmul.f32 %v776, %v771
    %v779 = vmul.f32 %v777, %v773
    %v780 = vadd.f32 %v778, 1.4214138
    %v781 = vadd.f32 %v779, 1.4214138
    %v782 = vmul.f32 %v780, %v771
    %v783 = vmul.f32 %v781, %v773
    %v784 = vadd.f32 %v782, -0.28449672
    %v785 = vadd.f32 %v783, -0.28449672
    %v786 = vmul.f32 %v784, %v771
    %v787 = vmul.f32 %v785, %v773
    %v788 = vadd.f32 %v786, 0.2548296
    %v789 = vadd.f32 %v787, 0.2548296
    %v790 = vmul.f32 %v788, %v771
    %v791 = vmul.f32 %v789, %v773
    %v792 = vsub.f32 0.0, %v764
    %v793 = vsub.f32 0.0, %v765
    %v794 = vmul.f32 %v792, %v764
    %v795 = vmul.f32 %v793, %v765
    %v796 = vmul.f32 %v794, 1.442695
    %v797 = vpow.pop %v796
    %v798 = vmul.f32 %v795, 1.442695
    %v799 = vpow.pop %v798
    %v800 = vmul.f32 %v790, %v797
    %v801 = vmul.f32 %v791, %v799
    %v802 = vsub.f32 1.0, %v800
    %v803 = vsub.f32 1.0, %v801
    %vm804 = vcmp.lt.f32.partialorder %v762, 0.0
    %vm805 = vcmp.lt.f32.partialorder %v763, 0.0
    %v806 = vsub.f32 0.0, %v802
    %v807 = vsub.f32 0.0, %v803
    %v808 = vsel %vm804, %v806, %v802
    %v809 = vsel %vm805, %v807, %v803
    %v810 = vadd.f32 %v808, 1.0
    %v811 = vadd.f32 %v809, 1.0
    %v812 = vmul.f32 %v760, %v810
    %v813 = vmul.f32 %v761, %v811
    %814 = vset.pattern.permute.xlu0 6
    %815 = vperm.xlu0 %814, %v34
    %v816 = vpop.permute.xlu0 %815
    %818 = vset.pattern.permute.xlu0 6
    %819 = vperm.xlu0 %818, %v35
    %v820 = vpop.permute.xlu0 %819
    %v822 = vmul.f32 %v812, %v816
    %v823 = vmul.f32 %v813, %v820
    %v824 = vadd.f32 %v822, %v823
    %v825 = vrot.slane %v824, 4
    %v826 = vadd.f32 %v824, %v825
    %v827 = vrot.slane %v826, 2
    %v828 = vadd.f32 %v826, %v827
    %v829 = vrot.slane %v828, 1
    %v830 = vadd.f32 %v828, %v829
    %831 = vset.pattern.permute.xlu0 7
    %832 = vperm.xlu0 %831, %v34
    %v833 = vpop.permute.xlu0 %832
    %v835 = vadd.f32 %v830, %v833
    %836 = vst [vmem:[#allocation2] sm:$0x1] %v835
    // Predicated region
    $region18: #{tpu_custom_call.1} parent=1 // pred_check
      _
    $region19: #{tpu_custom_call.1} parent=1 // pred_check_branch
      %838 = sbr.rel (0) target = $region21
    $region20: #{tpu_custom_call.1} parent=1 // pred_region
      %s840 = ssub.s32 16, 16
      %841 = vsyncadd [#allocation3], %s840
      %s843 = sshll.u32 [#allocation2], 4
      %s844 = int_to_ptr.vmem [resolvable:$true] %s843
      %846 = dma.vmem_to_hbm [thread:$0]  %s844, 16, %s4, [#allocation3]
    $region21: #{tpu_custom_call.1} parent=1 // pred_fallthru
      _
    // Predicated region
    $region22: #{tpu_custom_call.1} parent=1 // pred_check
      _
    $region23: #{tpu_custom_call.1} parent=1 // pred_check_branch
      %848 = sbr.rel (0) target = $region25
    $region24: #{tpu_custom_call.1} parent=1 // pred_region
      %849 = dma.done [#allocation3], 16
    $region25: #{tpu_custom_call.1} parent=1 // pred_fallthru
      _
    %850 = vsyncpa [#allocation3], 1

</llo_original>
